<compile_context>
chip_gen: v7x
topology: tpu7x:2x2x1
jax: 0.10.0
libtpu: 0.0.40
codegen_flags: <defaults>
</compile_context>

<pallas_src>
import functools

import jax
import jax.numpy as jnp
from jax.experimental import pallas as pl
from jax.experimental.pallas import tpu as pltpu

HIDDEN = 64


def _round_up(x, m):
    return ((x + m - 1) // m) * m


def critic_kernel(s_ref, a_ref, w1s_ref, w1a_ref, b1_ref,
                  w2_ref, b2_ref, w3_ref, b3_ref, o_ref):
    # fc1 with the concat fused away: cat([s, a]) @ W1 == s @ W1s + a @ W1a
    h1 = (jnp.dot(s_ref[...], w1s_ref[...], preferred_element_type=jnp.float32)
          + jnp.dot(a_ref[...], w1a_ref[...], preferred_element_type=jnp.float32)
          + b1_ref[...])
    h1 = jnp.maximum(h1, 0.0)

    # fc2
    h2 = jnp.dot(h1, w2_ref[...], preferred_element_type=jnp.float32) + b2_ref[...]
    h2 = jnp.maximum(h2, 0.0)

    # fc3 (output width 1): VPU multiply + lane-reduction (XLU) instead of an
    # N=1 MXU matmul; the (TILE_B, 1) store is tiny relative to the input DMA.
    q = jnp.sum(h2 * w3_ref[...], axis=-1, keepdims=True) + b3_ref[...]
    o_ref[...] = q.astype(o_ref.dtype)


def prepare_critic_params(raw_params, state_dim):
    """One-time conversion from PyTorch layout ((out,in) weights, (out,) biases)
    to the kernel layout: W1 split by state/action rows and transposed to
    (in, out); biases as (1, out) rows; W3 as a (1, 64) row vector."""
    w1, b1, w2, b2, w3, b3 = raw_params
    w1t = jnp.asarray(w1, jnp.float32).T                 # (S+A, 64)
    w1s = w1t[:state_dim]                                # (S, 64)
    w1a = w1t[state_dim:]                                # (A, 64)
    b1r = jnp.asarray(b1, jnp.float32).reshape(1, -1)    # (1, 64)
    w2t = jnp.asarray(w2, jnp.float32).T                 # (64, 64)
    b2r = jnp.asarray(b2, jnp.float32).reshape(1, -1)    # (1, 64)
    w3r = jnp.asarray(w3, jnp.float32).reshape(1, -1)    # (1, 64)
    b3r = jnp.asarray(b3, jnp.float32).reshape(1, 1)     # (1, 1)
    return (w1s, w1a, b1r, w2t, b2r, w3r, b3r)


@functools.partial(jax.jit, static_argnames=("tile_b",))
def critic_forward(state, action, prepared_params, tile_b=None):
    """state: (B, state_dim), action: (B, action_dim). Returns (B, 1) Q-values."""
    w1s, w1a, b1, w2, b2, w3, b3 = prepared_params
    state = state.astype(jnp.float32)
    action = action.astype(jnp.float32)
    B, S = state.shape
    A = action.shape[1]

    # Big batch tiles amortize the ~0.35us per-grid-step overhead; 2048 rows of
    # activations are only a few hundred KiB of VMEM per buffer.
    if tile_b is None:
        tile_b = min(2048, _round_up(B, 8))
    tile_b = max(8, _round_up(tile_b, 8))
    b_pad = _round_up(B, tile_b)
    if b_pad != B:
        state = jnp.pad(state, ((0, b_pad - B), (0, 0)))
        action = jnp.pad(action, ((0, b_pad - B), (0, 0)))

    grid = (b_pad // tile_b,)
    batch_map = lambda i: (i, 0)   # batch-tiled operands
    const_map = lambda i: (0, 0)   # weights/biases: resident across the grid

    out = pl.pallas_call(
        critic_kernel,
        out_shape=jax.ShapeDtypeStruct((b_pad, 1), jnp.float32),
        grid=grid,
        in_specs=[
            pl.BlockSpec((tile_b, S), batch_map),
            pl.BlockSpec((tile_b, A), batch_map),
            pl.BlockSpec(w1s.shape, const_map),
            pl.BlockSpec(w1a.shape, const_map),
            pl.BlockSpec(b1.shape, const_map),
            pl.BlockSpec(w2.shape, const_map),
            pl.BlockSpec(b2.shape, const_map),
            pl.BlockSpec(w3.shape, const_map),
            pl.BlockSpec(b3.shape, const_map),
        ],
        out_specs=pl.BlockSpec((tile_b, 1), batch_map),
        compiler_params=pltpu.CompilerParams(
            dimension_semantics=("parallel",)),
    )(state, action, w1s, w1a, b1, w2, b2, w3, b3)

    return out[:B]


def init_critic_params(key, state_dim, action_dim, hidden=HIDDEN):
    """Deterministic init mimicking nn.Linear's U(-1/sqrt(fan_in), 1/sqrt(fan_in)),
    returned in PyTorch layout ((out, in) weights, (out,) biases)."""
    def linear_init(k, fan_in, fan_out):
        kw, kb = jax.random.split(k)
        bound = 1.0 / jnp.sqrt(fan_in)
        w = jax.random.uniform(kw, (fan_out, fan_in), jnp.float32, -bound, bound)
        b = jax.random.uniform(kb, (fan_out,), jnp.float32, -bound, bound)
        return w, b

    k1, k2, k3 = jax.random.split(key, 3)
    w1, b1 = linear_init(k1, state_dim + action_dim, hidden)
    w2, b2 = linear_init(k2, hidden, hidden)
    w3, b3 = linear_init(k3, hidden, 1)
    return (w1, b1, w2, b2, w3, b3)


def critic_reference(state, action, raw_params):
    """Pure-JAX reference (PyTorch-layout params) for correctness checking."""
    w1, b1, w2, b2, w3, b3 = raw_params
    x = jnp.concatenate([state, action], axis=1)
    x = jnp.maximum(x @ w1.T + b1, 0.0)
    x = jnp.maximum(x @ w2.T + b2, 0.0)
    return x @ w3.T + b3


if __name__ == "__main__":
    key = jax.random.PRNGKey(0)
    k_params, k_s1, k_a1, k_s2, k_a2 = jax.random.split(key, 5)

    state_dim, action_dim = 8, 4
    raw_params = init_critic_params(k_params, state_dim, action_dim)
    params = prepare_critic_params(raw_params, state_dim)

    # Small case (typical DDPG usage shape).
    batch = 2
    state = jax.random.normal(k_s1, (batch, state_dim), jnp.float32)
    action = jax.random.normal(k_a1, (batch, action_dim), jnp.float32)
    q = critic_forward(state, action, params)
    jax.block_until_ready(q)
    q_ref = critic_reference(state, action, raw_params)
    assert q.shape == (batch, 1), q.shape
    assert jnp.allclose(q, q_ref, atol=1e-4, rtol=1e-5), (q, q_ref)

    # Multi-tile, ragged-batch case to exercise the grid + padding path.
    batch2 = 300
    state2 = jax.random.normal(k_s2, (batch2, state_dim), jnp.float32)
    action2 = jax.random.normal(k_a2, (batch2, action_dim), jnp.float32)
    q2 = critic_forward(state2, action2, params, tile_b=128)
    jax.block_until_ready(q2)
    q2_ref = critic_reference(state2, action2, raw_params)
    assert q2.shape == (batch2, 1), q2.shape
    assert jnp.allclose(q2, q2_ref, atol=1e-4, rtol=1e-5), (q2, q2_ref)

    print("KERNEL_OK")
</pallas_src>

<mosaic_0001>
module attributes {stable_mosaic.version = 11 : i64} {
  func.func @critic_kernel(%arg0: i32, %arg1: memref<8x8xf32, #tpu.memory_space<vmem>>, %arg2: memref<8x4xf32, #tpu.memory_space<vmem>>, %arg3: memref<8x64xf32, #tpu.memory_space<vmem>>, %arg4: memref<4x64xf32, #tpu.memory_space<vmem>>, %arg5: memref<1x64xf32, #tpu.memory_space<vmem>>, %arg6: memref<64x64xf32, #tpu.memory_space<vmem>>, %arg7: memref<1x64xf32, #tpu.memory_space<vmem>>, %arg8: memref<1x64xf32, #tpu.memory_space<vmem>>, %arg9: memref<1x1xf32, #tpu.memory_space<vmem>>, %arg10: memref<8x1xf32, #tpu.memory_space<vmem>>) attributes {dimension_semantics = [#tpu.dimension_semantics<parallel>], iteration_bounds = array<i64: 1>, scalar_prefetch = 0 : i64, scratch_operands = 0 : i64, tpu.core_type = #tpu.core_type<tc>, window_params = [{transform_indices = @transform_0, window_bounds = array<i64: 8, 8>}, {transform_indices = @transform_1, window_bounds = array<i64: 8, 4>}, {pipeline_mode = #tpu.pipeline_mode<synchronous>, transform_indices = @transform_2, window_bounds = array<i64: 8, 64>}, {pipeline_mode = #tpu.pipeline_mode<synchronous>, transform_indices = @transform_3, window_bounds = array<i64: 4, 64>}, {pipeline_mode = #tpu.pipeline_mode<synchronous>, transform_indices = @transform_4, window_bounds = array<i64: 1, 64>}, {pipeline_mode = #tpu.pipeline_mode<synchronous>, transform_indices = @transform_5, window_bounds = array<i64: 64, 64>}, {pipeline_mode = #tpu.pipeline_mode<synchronous>, transform_indices = @transform_6, window_bounds = array<i64: 1, 64>}, {pipeline_mode = #tpu.pipeline_mode<synchronous>, transform_indices = @transform_7, window_bounds = array<i64: 1, 64>}, {pipeline_mode = #tpu.pipeline_mode<synchronous>, transform_indices = @transform_8, window_bounds = array<i64: 1, 1>}, {transform_indices = @transform_9, window_bounds = array<i64: 8, 1>}]} {
    %c0 = arith.constant 0 : index
    %c0_0 = arith.constant 0 : index
    %0 = vector.load %arg1[%c0, %c0_0] : memref<8x8xf32, #tpu.memory_space<vmem>>, vector<8x8xf32>
    %c0_1 = arith.constant 0 : index
    %c0_2 = arith.constant 0 : index
    %1 = vector.load %arg3[%c0_1, %c0_2] : memref<8x64xf32, #tpu.memory_space<vmem>>, vector<8x64xf32>
    %cst = arith.constant dense<0.000000e+00> : vector<8x64xf32>
    %2 = tpu.matmul %0, %1, %cst {dimension_numbers = #tpu.dot_dimension_numbers<[1], [0], [0], [1], [0, 0, 1, 1], [], []>} : vector<8x8xf32>, vector<8x64xf32>, vector<8x64xf32> -> vector<8x64xf32>
    %c0_3 = arith.constant 0 : index
    %c0_4 = arith.constant 0 : index
    %3 = vector.load %arg2[%c0_3, %c0_4] : memref<8x4xf32, #tpu.memory_space<vmem>>, vector<8x4xf32>
    %c0_5 = arith.constant 0 : index
    %c0_6 = arith.constant 0 : index
    %4 = vector.load %arg4[%c0_5, %c0_6] : memref<4x64xf32, #tpu.memory_space<vmem>>, vector<4x64xf32>
    %cst_7 = arith.constant dense<0.000000e+00> : vector<8x64xf32>
    %5 = tpu.matmul %3, %4, %cst_7 {dimension_numbers = #tpu.dot_dimension_numbers<[1], [0], [0], [1], [0, 0, 1, 1], [], []>} : vector<8x4xf32>, vector<4x64xf32>, vector<8x64xf32> -> vector<8x64xf32>
    %6 = arith.addf %2, %5 : vector<8x64xf32>
    %c0_8 = arith.constant 0 : index
    %c0_9 = arith.constant 0 : index
    %7 = vector.load %arg5[%c0_8, %c0_9] : memref<1x64xf32, #tpu.memory_space<vmem>>, vector<1x64xf32>
    %8 = vector.broadcast %7 : vector<1x64xf32> to vector<8x64xf32>
    %9 = arith.addf %6, %8 : vector<8x64xf32>
    %cst_10 = arith.constant 0.000000e+00 : f32
    %10 = vector.broadcast %cst_10 : f32 to vector<8x64xf32>
    %11 = arith.maximumf %9, %10 : vector<8x64xf32>
    %c0_11 = arith.constant 0 : index
    %c0_12 = arith.constant 0 : index
    %12 = vector.load %arg6[%c0_11, %c0_12] : memref<64x64xf32, #tpu.memory_space<vmem>>, vector<64x64xf32>
    %cst_13 = arith.constant dense<0.000000e+00> : vector<8x64xf32>
    %13 = tpu.matmul %11, %12, %cst_13 {dimension_numbers = #tpu.dot_dimension_numbers<[1], [0], [0], [1], [0, 0, 1, 1], [], []>} : vector<8x64xf32>, vector<64x64xf32>, vector<8x64xf32> -> vector<8x64xf32>
    %c0_14 = arith.constant 0 : index
    %c0_15 = arith.constant 0 : index
    %14 = vector.load %arg7[%c0_14, %c0_15] : memref<1x64xf32, #tpu.memory_space<vmem>>, vector<1x64xf32>
    %15 = vector.broadcast %14 : vector<1x64xf32> to vector<8x64xf32>
    %16 = arith.addf %13, %15 : vector<8x64xf32>
    %cst_16 = arith.constant 0.000000e+00 : f32
    %17 = vector.broadcast %cst_16 : f32 to vector<8x64xf32>
    %18 = arith.maximumf %16, %17 : vector<8x64xf32>
    %c0_17 = arith.constant 0 : index
    %c0_18 = arith.constant 0 : index
    %19 = vector.load %arg8[%c0_17, %c0_18] : memref<1x64xf32, #tpu.memory_space<vmem>>, vector<1x64xf32>
    %20 = vector.broadcast %19 : vector<1x64xf32> to vector<8x64xf32>
    %21 = arith.mulf %18, %20 : vector<8x64xf32>
    %cst_19 = arith.constant dense<0.000000e+00> : vector<8xf32>
    %22 = vector.multi_reduction <add>, %21, %cst_19 [1] : vector<8x64xf32> to vector<8xf32>
    %23 = vector.shape_cast %22 : vector<8xf32> to vector<8x1xf32>
    %c0_20 = arith.constant 0 : index
    %c0_21 = arith.constant 0 : index
    %24 = vector.load %arg9[%c0_20, %c0_21] : memref<1x1xf32, #tpu.memory_space<vmem>>, vector<1x1xf32>
    %25 = vector.broadcast %24 : vector<1x1xf32> to vector<8x1xf32>
    %26 = arith.addf %23, %25 : vector<8x1xf32>
    %c0_22 = arith.constant 0 : index
    %c0_23 = arith.constant 0 : index
    %27 = vector.load %arg10[%c0_22, %c0_23] : memref<8x1xf32, #tpu.memory_space<vmem>>, vector<8x1xf32>
    tpu.vector_store %arg10[%c0_22, %c0_23], %26 {strides = array<i32>} : memref<8x1xf32, #tpu.memory_space<vmem>>, vector<8x1xf32>,
    return
  }
  func.func @transform_0(%arg0: i32) -> (i32, i32) {
    %c0_i32 = arith.constant 0 : i32
    %c0_i32_0 = arith.constant 0 : i32
    return %arg0, %c0_i32 : i32, i32
  }
  func.func @transform_1(%arg0: i32) -> (i32, i32) {
    %c0_i32 = arith.constant 0 : i32
    %c0_i32_0 = arith.constant 0 : i32
    return %arg0, %c0_i32 : i32, i32
  }
  func.func @transform_2(%arg0: i32) -> (i32, i32) {
    %c0_i32 = arith.constant 0 : i32
    %c0_i32_0 = arith.constant 0 : i32
    %c0_i32_1 = arith.constant 0 : i32
    return %c0_i32, %c0_i32_0 : i32, i32
  }
  func.func @transform_3(%arg0: i32) -> (i32, i32) {
    %c0_i32 = arith.constant 0 : i32
    %c0_i32_0 = arith.constant 0 : i32
    %c0_i32_1 = arith.constant 0 : i32
    return %c0_i32, %c0_i32_0 : i32, i32
  }
  func.func @transform_4(%arg0: i32) -> (i32, i32) {
    %c0_i32 = arith.constant 0 : i32
    %c0_i32_0 = arith.constant 0 : i32
    %c0_i32_1 = arith.constant 0 : i32
    return %c0_i32, %c0_i32_0 : i32, i32
  }
  func.func @transform_5(%arg0: i32) -> (i32, i32) {
    %c0_i32 = arith.constant 0 : i32
    %c0_i32_0 = arith.constant 0 : i32
    %c0_i32_1 = arith.constant 0 : i32
    return %c0_i32, %c0_i32_0 : i32, i32
  }
  func.func @transform_6(%arg0: i32) -> (i32, i32) {
    %c0_i32 = arith.constant 0 : i32
    %c0_i32_0 = arith.constant 0 : i32
    %c0_i32_1 = arith.constant 0 : i32
    return %c0_i32, %c0_i32_0 : i32, i32
  }
  func.func @transform_7(%arg0: i32) -> (i32, i32) {
    %c0_i32 = arith.constant 0 : i32
    %c0_i32_0 = arith.constant 0 : i32
    %c0_i32_1 = arith.constant 0 : i32
    return %c0_i32, %c0_i32_0 : i32, i32
  }
  func.func @transform_8(%arg0: i32) -> (i32, i32) {
    %c0_i32 = arith.constant 0 : i32
    %c0_i32_0 = arith.constant 0 : i32
    %c0_i32_1 = arith.constant 0 : i32
    return %c0_i32, %c0_i32_0 : i32, i32
  }
  func.func @transform_9(%arg0: i32) -> (i32, i32) {
    %c0_i32 = arith.constant 0 : i32
    %c0_i32_0 = arith.constant 0 : i32
    return %arg0, %c0_i32 : i32, i32
  }
}

</mosaic_0001>

<llo_original>
// kernel: critic_forward.1
$region0: #{critic_forward.1}
  #allocation0 [shape = 'u32[]', space=smem, size = 0x4, offset = 0x4, fixed_abs, tag = 'smem constant byte address 0x4 - core index']
  #allocation1 [shape = 'u32[144,128]{1,0:T(1,128)}', space=vmem, size = 0x12000, scoped, tag = 'internal scratch']
  #allocation2 [shape = 'f32[1,1]{1,0:T(1,128)S(1)}', space=vmem, size = 0x200, scoped, tag = 'scoped memory for critic_forward.1']
  %s0 = inlined_call_operand.vmem [shape: f32[8,8], index: 0, kind: input, shape index: {}]
  %s1 = inlined_call_operand.vmem [shape: f32[8,4], index: 1, kind: input, shape index: {}]
  %s2 = inlined_call_operand.vmem [shape: f32[8,64], index: 2, kind: input, shape index: {}]
  %s3 = inlined_call_operand.vmem [shape: f32[4,64], index: 3, kind: input, shape index: {}]
  %s4 = inlined_call_operand.vmem [shape: f32[1,64], index: 4, kind: input, shape index: {}]
  %s5 = inlined_call_operand.hbm [shape: f32[64,64], index: 5, kind: input, shape index: {}]
  %s6 = inlined_call_operand.vmem [shape: f32[1,64], index: 6, kind: input, shape index: {}]
  %s7 = inlined_call_operand.vmem [shape: f32[1,64], index: 7, kind: input, shape index: {}]
  %s8 = inlined_call_operand.<no memory space> [shape: f32[1,1], index: 8, kind: input, shape index: {}]
  %s9 = inlined_call_operand.vmem [shape: f32[8,1], index: 9, kind: output, shape index: {}]
  %s10 = sld [smem:[#allocation0]]
  $region50: #{critic_forward.1} parent=0
    _
  %s12 = ssub.s32 1, %s10
  %s13 = scalar_select 0, %s12, %s10
  %v14 = vstv %s8
  %15 = vst [vmem:[#allocation2] sm:$0x1] %v14
  $region1: #{critic_forward.1} parent=0
    #allocation3 [shape = 'u8[32768]{0}', space=vmem, size = 0x8000, scoped, tag = 'input window, operand 5, single buffered']
    #allocation4 [shape = 's32[1]{0}', space=sflag, size = 0x4, scoped, tag = 'scoped memory for critic_forward.1']
    %16 = vsyncpa [#allocation4], 0
    // Predicated region
    $region2: #{critic_forward.1} parent=1 // pred_check
      _
    $region3: #{critic_forward.1} parent=1 // pred_check_branch
      %18 = sbr.rel (0) target = $region5
    $region4: #{critic_forward.1} parent=1 // pred_region
      _
    $region5: #{critic_forward.1} parent=1 // pred_fallthru
      _
    // Predicated region
    $region6: #{critic_forward.1} parent=1 // pred_check
      _
    $region7: #{critic_forward.1} parent=1 // pred_check_branch
      %20 = sbr.rel (0) target = $region9
    $region8: #{critic_forward.1} parent=1 // pred_region
      _
    $region9: #{critic_forward.1} parent=1 // pred_fallthru
      _
    // Predicated region
    $region10: #{critic_forward.1} parent=1 // pred_check
      _
    $region11: #{critic_forward.1} parent=1 // pred_check_branch
      %22 = sbr.rel (0) target = $region13
    $region12: #{critic_forward.1} parent=1 // pred_region
      _
    $region13: #{critic_forward.1} parent=1 // pred_fallthru
      _
    // Predicated region
    $region14: #{critic_forward.1} parent=1 // pred_check
      _
    $region15: #{critic_forward.1} parent=1 // pred_check_branch
      %24 = sbr.rel (0) target = $region17
    $region16: #{critic_forward.1} parent=1 // pred_region
      _
    $region17: #{critic_forward.1} parent=1 // pred_fallthru
      _
    // Predicated region
    $region18: #{critic_forward.1} parent=1 // pred_check
      _
    $region19: #{critic_forward.1} parent=1 // pred_check_branch
      %26 = sbr.rel (0) target = $region21
    $region20: #{critic_forward.1} parent=1 // pred_region
      _
    $region21: #{critic_forward.1} parent=1 // pred_fallthru
      _
    // Predicated region
    $region22: #{critic_forward.1} parent=1 // pred_check
      _
    $region23: #{critic_forward.1} parent=1 // pred_check_branch
      %28 = sbr.rel (0) target = $region25
    $region24: #{critic_forward.1} parent=1 // pred_region
      %s30 = ssub.s32 1024, 1024
      %31 = vsyncadd [#allocation4], %s30
      %s32 = sshll.u32 [#allocation3], 4
      %s33 = int_to_ptr.vmem [resolvable:$true] %s32
      %38 = dma.hbm_to_vmem [thread:$0]  %s5, 1024, %s33, [#allocation4], 128, 128, 8
    $region25: #{critic_forward.1} parent=1 // pred_fallthru
      _
    // Predicated region
    $region26: #{critic_forward.1} parent=1 // pred_check
      _
    $region27: #{critic_forward.1} parent=1 // pred_check_branch
      %40 = sbr.rel (0) target = $region29
    $region28: #{critic_forward.1} parent=1 // pred_region
      _
    $region29: #{critic_forward.1} parent=1 // pred_fallthru
      _
    // Predicated region
    $region30: #{critic_forward.1} parent=1 // pred_check
      _
    $region31: #{critic_forward.1} parent=1 // pred_check_branch
      %42 = sbr.rel (0) target = $region33
    $region32: #{critic_forward.1} parent=1 // pred_region
      _
    $region33: #{critic_forward.1} parent=1 // pred_fallthru
      _
    // Predicated region
    $region34: #{critic_forward.1} parent=1 // pred_check
      _
    $region35: #{critic_forward.1} parent=1 // pred_check_branch
      %44 = sbr.rel (0) target = $region37
    $region36: #{critic_forward.1} parent=1 // pred_region
      _
    $region37: #{critic_forward.1} parent=1 // pred_fallthru
      _
    // Predicated region
    $region38: #{critic_forward.1} parent=1 // pred_check
      _
    $region39: #{critic_forward.1} parent=1 // pred_check_branch
      %46 = sbr.rel (0) target = $region41
    $region40: #{critic_forward.1} parent=1 // pred_region
      %47 = dma.done [#allocation4], 1024
    $region41: #{critic_forward.1} parent=1 // pred_fallthru
      _
    %v48 = vld [vmem:[%s0] sm:$0xff]
    %v49 = vld [vmem:[%s2] sm:$0xff]
    %v50 = vld [vmem:[%s1] sm:$0xff]
    %v51 = vld [vmem:[%s3] sm:$0xf]
    %vm52 = vcmask 31744
    %v54 = vsel %vm52, %v50, 0
    %vm56 = vcmask 1043456
    %v58 = vsel %vm56, %v51, 0
    %60 = vmatprep.subr.mxu0 0.0
    %61 = vmatpush1.msra.mxu0 %v58
    %62 = vmatprep.subr.mxu0 0.0
    %63 = vmatpush1.msra.mxu0 0.0
    %64 = vmatprep.subr.mxu0 0.0
    %65 = vmatpush1.msra.mxu0 0.0
    %66 = vmatprep.subr.mxu0 0.0
    %67 = vmatpush1.msra.mxu0 0.0
    %68 = vmatprep.subr.mxu0 0.0
    %69 = vmatpush1.msra.mxu0 0.0
    %70 = vmatprep.subr.mxu0 0.0
    %71 = vmatpush1.msra.mxu0 0.0
    %72 = vmatprep.subr.mxu0 0.0
    %73 = vmatpush1.msra.mxu0 0.0
    %74 = vmatprep.subr.mxu0 0.0
    %75 = vmatpush1.msra.mxu0 0.0
    %76 = vmatprep.subr.mxu0 0.0
    %77 = vmatpush1.msra.mxu0 0.0
    %78 = vmatprep.subr.mxu0 0.0
    %79 = vmatpush1.msra.mxu0 0.0
    %80 = vmatprep.subr.mxu0 0.0
    %81 = vmatpush1.msra.mxu0 0.0
    %82 = vmatprep.subr.mxu0 0.0
    %83 = vmatpush1.msra.mxu0 0.0
    %84 = vmatprep.subr.mxu0 0.0
    %85 = vmatpush1.msra.mxu0 0.0
    %86 = vmatprep.subr.mxu0 0.0
    %87 = vmatpush1.msra.mxu0 0.0
    %88 = vmatprep.subr.mxu0 0.0
    %89 = vmatpush1.msra.mxu0 0.0
    %90 = vmatprep.subr.mxu0 0.0
    %91 = vmatpush1.msra.mxu0 0.0
    %92 = vmatprep.subr.mxu0 0.0
    %93 = vmatpush1.msra.mxu0 0.0
    %94 = vmatprep.subr.mxu0 0.0
    %95 = vmatpush1.msra.mxu0 0.0
    %96 = vmatprep.subr.mxu0 0.0
    %97 = vmatpush1.msra.mxu0 0.0
    %98 = vmatprep.subr.mxu0 0.0
    %99 = vmatpush1.msra.mxu0 0.0
    %100 = vmatprep.subr.mxu0 0.0
    %101 = vmatpush1.msra.mxu0 0.0
    %102 = vmatprep.subr.mxu0 0.0
    %103 = vmatpush1.msra.mxu0 0.0
    %104 = vmatprep.subr.mxu0 0.0
    %105 = vmatpush1.msra.mxu0 0.0
    %106 = vmatprep.subr.mxu0 0.0
    %107 = vmatpush1.msra.mxu0 0.0
    %108 = vmatprep.subr.mxu0 0.0
    %109 = vmatpush1.msra.mxu0 0.0
    %110 = vmatprep.subr.mxu0 0.0
    %111 = vmatpush1.msra.mxu0 0.0
    %112 = vmatprep.subr.mxu0 0.0
    %113 = vmatpush1.msra.mxu0 0.0
    %114 = vmatprep.subr.mxu0 0.0
    %115 = vmatpush1.msra.mxu0 0.0
    %116 = vmatprep.subr.mxu0 0.0
    %117 = vmatpush1.msra.mxu0 0.0
    %118 = vmatprep.subr.mxu0 0.0
    %119 = vmatpush1.msra.mxu0 0.0
    %120 = vmatprep.subr.mxu0 0.0
    %121 = vmatpush1.msra.mxu0 0.0
    %122 = vmatprep.subr.mxu0 0.0
    %123 = vmatpush1.msra.mxu0 0.0
    %124 = vmatprep.mubr.f32.mxu0 0.0
    %125 = vmatmul.mubr.f32.gmra.mrb[0].mxu0 %v54
    %v126 = vpop.f32.mrb[0].mxu0
    %v127 = vadd.f32 0.0, %v126
    %v128 = vpop.f32.mrb[0].mxu0
    %129 = vdwg.mxu0
    %vm130 = vcmask 64512
    %v132 = vsel %vm130, %v48, 0
    %134 = vmatprep.subr.mxu0 0.0
    %135 = vmatpush1.msra.mxu0 %v49
    %136 = vmatprep.subr.mxu0 0.0
    %137 = vmatpush1.msra.mxu0 0.0
    %138 = vmatprep.subr.mxu0 0.0
    %139 = vmatpush1.msra.mxu0 0.0
    %140 = vmatprep.subr.mxu0 0.0
    %141 = vmatpush1.msra.mxu0 0.0
    %142 = vmatprep.subr.mxu0 0.0
    %143 = vmatpush1.msra.mxu0 0.0
    %144 = vmatprep.subr.mxu0 0.0
    %145 = vmatpush1.msra.mxu0 0.0
    %146 = vmatprep.subr.mxu0 0.0
    %147 = vmatpush1.msra.mxu0 0.0
    %148 = vmatprep.subr.mxu0 0.0
    %149 = vmatpush1.msra.mxu0 0.0
    %150 = vmatprep.subr.mxu0 0.0
    %151 = vmatpush1.msra.mxu0 0.0
    %152 = vmatprep.subr.mxu0 0.0
    %153 = vmatpush1.msra.mxu0 0.0
    %154 = vmatprep.subr.mxu0 0.0
    %155 = vmatpush1.msra.mxu0 0.0
    %156 = vmatprep.subr.mxu0 0.0
    %157 = vmatpush1.msra.mxu0 0.0
    %158 = vmatprep.subr.mxu0 0.0
    %159 = vmatpush1.msra.mxu0 0.0
    %160 = vmatprep.subr.mxu0 0.0
    %161 = vmatpush1.msra.mxu0 0.0
    %162 = vmatprep.subr.mxu0 0.0
    %163 = vmatpush1.msra.mxu0 0.0
    %164 = vmatprep.subr.mxu0 0.0
    %165 = vmatpush1.msra.mxu0 0.0
    %166 = vmatprep.subr.mxu0 0.0
    %167 = vmatpush1.msra.mxu0 0.0
    %168 = vmatprep.subr.mxu0 0.0
    %169 = vmatpush1.msra.mxu0 0.0
    %170 = vmatprep.subr.mxu0 0.0
    %171 = vmatpush1.msra.mxu0 0.0
    %172 = vmatprep.subr.mxu0 0.0
    %173 = vmatpush1.msra.mxu0 0.0
    %174 = vmatprep.subr.mxu0 0.0
    %175 = vmatpush1.msra.mxu0 0.0
    %176 = vmatprep.subr.mxu0 0.0
    %177 = vmatpush1.msra.mxu0 0.0
    %178 = vmatprep.subr.mxu0 0.0
    %179 = vmatpush1.msra.mxu0 0.0
    %180 = vmatprep.subr.mxu0 0.0
    %181 = vmatpush1.msra.mxu0 0.0
    %182 = vmatprep.subr.mxu0 0.0
    %183 = vmatpush1.msra.mxu0 0.0
    %184 = vmatprep.subr.mxu0 0.0
    %185 = vmatpush1.msra.mxu0 0.0
    %186 = vmatprep.subr.mxu0 0.0
    %187 = vmatpush1.msra.mxu0 0.0
    %188 = vmatprep.subr.mxu0 0.0
    %189 = vmatpush1.msra.mxu0 0.0
    %190 = vmatprep.subr.mxu0 0.0
    %191 = vmatpush1.msra.mxu0 0.0
    %192 = vmatprep.subr.mxu0 0.0
    %193 = vmatpush1.msra.mxu0 0.0
    %194 = vmatprep.subr.mxu0 0.0
    %195 = vmatpush1.msra.mxu0 0.0
    %196 = vmatprep.subr.mxu0 0.0
    %197 = vmatpush1.msra.mxu0 0.0
    %198 = vmatprep.mubr.f32.mxu0 0.0
    %199 = vmatmul.mubr.f32.gmra.mrb[0].mxu0 %v132
    %v200 = vpop.f32.mrb[0].mxu0
    %v201 = vadd.f32 %v127, %v200
    %v202 = vpop.f32.mrb[0].mxu0
    %203 = vdwg.mxu0
    %v204 = vld [vmem:[%s4] sm:$0x1]
    %v206 = vlaneseq
    %v207 = vshrl.u32 %v206, 7
    %v208 = vsub.s32 0, %v207
    %v209 = vrot.slane %v204, %v208
    %v211 = vadd.f32 %v201, %v209
    %v212 = vmax.f32 %v211, 0.0
    %v213 = vld [vmem:[#allocation3] sm:$0xff]
    %v214 = vld [vmem:[#allocation3 + $0x8] sm:$0xff]
    %v215 = vld [vmem:[#allocation3 + $0x10] sm:$0xff]
    %v216 = vld [vmem:[#allocation3 + $0x18] sm:$0xff]
    %v217 = vld [vmem:[#allocation3 + $0x20] sm:$0xff]
    %v218 = vld [vmem:[#allocation3 + $0x28] sm:$0xff]
    %v219 = vld [vmem:[#allocation3 + $0x30] sm:$0xff]
    %v220 = vld [vmem:[#allocation3 + $0x38] sm:$0xff]
    %v221 = vld [vmem:[%s6] sm:$0x1]
    %v223 = vlaneseq
    %v224 = vshrl.u32 %v223, 7
    %v225 = vsub.s32 0, %v224
    %v226 = vrot.slane %v221, %v225
    %vm228 = vcmask 523264
    %v230 = vsel %vm228, %v212, 0
    %232 = vmatprep.subr.mxu0 0.0
    %233 = vmatpush1.msra.mxu0 %v213
    %234 = vmatprep.subr.mxu0 0.0
    %235 = vmatpush1.msra.mxu0 %v214
    %236 = vmatprep.subr.mxu0 0.0
    %237 = vmatpush1.msra.mxu0 %v215
    %238 = vmatprep.subr.mxu0 0.0
    %239 = vmatpush1.msra.mxu0 %v216
    %240 = vmatprep.subr.mxu0 0.0
    %241 = vmatpush1.msra.mxu0 %v217
    %242 = vmatprep.subr.mxu0 0.0
    %243 = vmatpush1.msra.mxu0 %v218
    %244 = vmatprep.subr.mxu0 0.0
    %245 = vmatpush1.msra.mxu0 %v219
    %246 = vmatprep.subr.mxu0 0.0
    %247 = vmatpush1.msra.mxu0 %v220
    %248 = vmatprep.subr.mxu0 0.0
    %249 = vmatpush1.msra.mxu0 0.0
    %250 = vmatprep.subr.mxu0 0.0
    %251 = vmatpush1.msra.mxu0 0.0
    %252 = vmatprep.subr.mxu0 0.0
    %253 = vmatpush1.msra.mxu0 0.0
    %254 = vmatprep.subr.mxu0 0.0
    %255 = vmatpush1.msra.mxu0 0.0
    %256 = vmatprep.subr.mxu0 0.0
    %257 = vmatpush1.msra.mxu0 0.0
    %258 = vmatprep.subr.mxu0 0.0
    %259 = vmatpush1.msra.mxu0 0.0
    %260 = vmatprep.subr.mxu0 0.0
    %261 = vmatpush1.msra.mxu0 0.0
    %262 = vmatprep.subr.mxu0 0.0
    %263 = vmatpush1.msra.mxu0 0.0
    %264 = vmatprep.subr.mxu0 0.0
    %265 = vmatpush1.msra.mxu0 0.0
    %266 = vmatprep.subr.mxu0 0.0
    %267 = vmatpush1.msra.mxu0 0.0
    %268 = vmatprep.subr.mxu0 0.0
    %269 = vmatpush1.msra.mxu0 0.0
    %270 = vmatprep.subr.mxu0 0.0
    %271 = vmatpush1.msra.mxu0 0.0
    %272 = vmatprep.subr.mxu0 0.0
    %273 = vmatpush1.msra.mxu0 0.0
    %274 = vmatprep.subr.mxu0 0.0
    %275 = vmatpush1.msra.mxu0 0.0
    %276 = vmatprep.subr.mxu0 0.0
    %277 = vmatpush1.msra.mxu0 0.0
    %278 = vmatprep.subr.mxu0 0.0
    %279 = vmatpush1.msra.mxu0 0.0
    %280 = vmatprep.subr.mxu0 0.0
    %281 = vmatpush1.msra.mxu0 0.0
    %282 = vmatprep.subr.mxu0 0.0
    %283 = vmatpush1.msra.mxu0 0.0
    %284 = vmatprep.subr.mxu0 0.0
    %285 = vmatpush1.msra.mxu0 0.0
    %286 = vmatprep.subr.mxu0 0.0
    %287 = vmatpush1.msra.mxu0 0.0
    %288 = vmatprep.subr.mxu0 0.0
    %289 = vmatpush1.msra.mxu0 0.0
    %290 = vmatprep.subr.mxu0 0.0
    %291 = vmatpush1.msra.mxu0 0.0
    %292 = vmatprep.subr.mxu0 0.0
    %293 = vmatpush1.msra.mxu0 0.0
    %294 = vmatprep.subr.mxu0 0.0
    %295 = vmatpush1.msra.mxu0 0.0
    %296 = vmatprep.mubr.f32.mxu0 0.0
    %297 = vmatmul.mubr.f32.gmra.mrb[0].mxu0 %v230
    %v298 = vpop.f32.mrb[0].mxu0
    %v299 = vadd.f32 %v226, %v298
    %v300 = vpop.f32.mrb[0].mxu0
    %301 = vdwg.mxu0
    %v302 = vmax.f32 %v299, 0.0
    %v303 = vld [vmem:[%s7] sm:$0x1]
    %v305 = vlaneseq
    %v306 = vshrl.u32 %v305, 7
    %v307 = vsub.s32 0, %v306
    %v308 = vrot.slane %v303, %v307
    %v310 = vmul.f32 %v302, %v308
    %v311 = vsel %vm228, %v310, 0.0
    %312 = vadd.xlane.f32.xlu0 %v311
    %v313 = vpop.xlane.xlu0 %312
    %v314 = vld [vmem:[#allocation2] sm:$0x1]
    %v316 = vlaneseq
    %v317 = vshrl.u32 %v316, 7
    %v318 = vsub.s32 0, %v317
    %v319 = vrot.slane %v314, %v318
    %v321 = vadd.f32 %v313, %v319
    %vm322 = vcmask 7168
    %323 = vst.msk [vmem:[%s9] sm:$0xff] %vm322, %v321
    // Predicated region
    $region42: #{critic_forward.1} parent=1 // pred_check
      _
    $region43: #{critic_forward.1} parent=1 // pred_check_branch
      %325 = sbr.rel (0) target = $region45
    $region44: #{critic_forward.1} parent=1 // pred_region
      _
    $region45: #{critic_forward.1} parent=1 // pred_fallthru
      _
    // Predicated region
    $region46: #{critic_forward.1} parent=1 // pred_check
      _
    $region47: #{critic_forward.1} parent=1 // pred_check_branch
      %327 = sbr.rel (0) target = $region49
    $region48: #{critic_forward.1} parent=1 // pred_region
      _
    $region49: #{critic_forward.1} parent=1 // pred_fallthru
      _
    %328 = vsyncpa [#allocation4], 1

</llo_original>
